<compile_context>
chip_gen: v7x
topology: tpu7x:2x2x1
jax: 0.10.0
libtpu: 0.0.40
codegen_flags: <defaults>
</compile_context>

<pallas_src>
import functools

import numpy as np
import jax
import jax.numpy as jnp
from jax import lax
from jax.experimental import pallas as pl
from jax.experimental.pallas import tpu as pltpu


# ----------------------------------------------------------------------------
# Configuration (small, deterministic stand-ins for the original sizes)
# ----------------------------------------------------------------------------
IMG = 32            # image H = W          (original: variable, e.g. 256)
PATCH = 4           # synthetic "DINOv2" patch size
GRID = IMG // PATCH
DINO_C = 128        # synthetic feature channels (lane-dense; original 768/1024)
PATCH_D = 3 * PATCH * PATCH          # 48
K_PAD = 64                           # padded patch dim (sublane-friendly)
FEAT = 16           # upsampled feature resolution (original: 64)
FG_NUM = 8          # number of FPS prototypes (original: 40)
N_SELECT = 4        # selected prototypes      (original: 10)
SCALER = 5.0

N_PIX = IMG * IMG
HW = FEAT * FEAT
N_HIGH_SIM = int(0.1 * N_PIX)
N_HIGH_UNC = int(0.2 * N_PIX)
N_NEG = int(0.05 * N_PIX)
N_GUIDED = min(2, N_HIGH_SIM // 2)
# padded prototype axis: N_SELECT selected rows + 1 support-prototype row,
# rounded up to the 8-sublane granule.
P_PAD = max(8, ((N_SELECT + 1 + 7) // 8) * 8)

# Working sets here are <= ~2 MiB, so a fixed 32 MiB scoped-VMEM budget is safe
# on every generation (v5e/v6e 128 MiB, v7x 64 MiB physical).
VMEM_LIMIT = 32 * 1024 * 1024


# ----------------------------------------------------------------------------
# Bilinear-resize matrices (PyTorch F.interpolate semantics) — matmul resize
# ----------------------------------------------------------------------------
def _bilinear_matrix(out_size, in_size, align_corners):
    if align_corners:
        if out_size > 1:
            src = np.linspace(0.0, in_size - 1.0, out_size)
        else:
            src = np.zeros((out_size,), np.float64)
    else:
        src = np.clip((np.arange(out_size) + 0.5) * (in_size / out_size) - 0.5,
                      0.0, in_size - 1.0)
    i0 = np.clip(np.floor(src), 0, in_size - 1).astype(np.int64)
    i1 = np.minimum(i0 + 1, in_size - 1)
    w1 = (src - i0).astype(np.float32)
    w0 = 1.0 - w1
    mat = np.zeros((out_size, in_size), np.float32)
    mat[np.arange(out_size), i0] += w0
    mat[np.arange(out_size), i1] += w1
    return mat


L_G2F = _bilinear_matrix(FEAT, GRID, True)     # feature upsample   (align_corners=True)
L_I2F_NA = _bilinear_matrix(FEAT, IMG, False)  # FPS fg-mask resize (align_corners=False)
L_I2F_AC = _bilinear_matrix(FEAT, IMG, True)   # AMCPG supp-mask    (align_corners=True)
L_F2I = _bilinear_matrix(IMG, FEAT, True)      # sim-map upsample   (align_corners=True)
# Kron formulation of the separable FEAT->IMG bilinear upsample: one matmul
# per kernel instead of 2*N_SELECT tiny ones.  (256, 1024) f32 ~= 1 MiB.
KRON_T = np.kron(L_F2I, L_F2I).T.copy()        # (HW, N_PIX)


def resize2d_mm(x, ly, lx):
    # bilinear resize of a 2-D map via two small matmuls (no gathers)
    t = jnp.einsum('oh,hw->ow', jnp.asarray(ly), x,
                   preferred_element_type=jnp.float32)
    return jnp.einsum('pw,ow->op', jnp.asarray(lx), t,
                      preferred_element_type=jnp.float32)


def resize_nhwc_mm(x, ly, lx):
    # bilinear resize of (B, H, W, C) features via MXU matmuls, C stays on lanes
    t = jnp.einsum('oh,bhwc->bowc', jnp.asarray(ly), x,
                   preferred_element_type=jnp.float32)
    return jnp.einsum('pw,bowc->bopc', jnp.asarray(lx), t,
                      preferred_element_type=jnp.float32)


# ----------------------------------------------------------------------------
# Pallas kernels
# ----------------------------------------------------------------------------
def _full_spec(shape):
    n = len(shape)
    return pl.BlockSpec(shape, lambda *args, _n=n: (0,) * _n)


def _patch_embed_kernel(x_ref, w_ref, o_ref):
    # (M, K) bf16 @ (K, C) bf16 -> (M, C) bf16 (f32 accumulation on MXU)
    o_ref[...] = jnp.dot(x_ref[...], w_ref[...],
                         preferred_element_type=jnp.float32).astype(o_ref.dtype)


def _episode_fused_kernel(q_ref, p_ref, s_ref, m_ref, k_ref,
                          mean_ref, var_ref, supp_ref, *, scale, n_sel):
    # FUSED per-episode kernel:
    #   1) normalize query rows ONCE (f32, reused for all cosine maps)
    #   2) masked average-pool support prototype (exact division)
    #   3) single (P_PAD, C)@(C, HW) cosine dot — selected prototypes scaled
    #      by `scale`, support prototype riding in spare row `n_sel`
    #   4) single Kron-matrix matmul upsampling all maps to (·, H*W) lanes
    #   5) two-pass mean / unbiased variance over the n_sel selected maps
    eps = 1e-8

    # ---- query-row normalization --------------------------------------------
    # NOTE: PyTorch F.cosine_similarity clamps the *product* of norms at eps;
    # clamping each factor separately only differs when a norm is < eps.
    q = q_ref[...].astype(jnp.float32)                           # (HW, C)
    qn = q * lax.rsqrt(jnp.maximum(jnp.sum(q * q, axis=-1, keepdims=True),
                                   eps * eps))
    qn_b = qn.astype(jnp.bfloat16)

    # ---- masked average pooling -> support prototype -------------------------
    s = s_ref[...].astype(jnp.float32)                           # (HW, C)
    m = m_ref[...]                                               # (1, HW) f32
    num = lax.dot_general(m, s, (((1,), (0,)), ((), ())),
                          preferred_element_type=jnp.float32)    # (1, C)
    den = jnp.sum(m, axis=-1, keepdims=True) + 1e-5              # (1, 1)
    proto = num / den                                            # exact division
    prn = proto * lax.rsqrt(
        jnp.maximum(jnp.sum(proto * proto, axis=-1, keepdims=True), eps * eps))

    # ---- selected prototypes: normalize, scale, pack support-proto row ------
    p = p_ref[...]                                               # (P_PAD, C) f32
    pn = p * lax.rsqrt(jnp.maximum(jnp.sum(p * p, axis=-1, keepdims=True),
                                   eps * eps))
    row = lax.broadcasted_iota(jnp.int32, (p.shape[0], 1), 0)    # (P_PAD, 1)
    sel_mask = (row < n_sel).astype(jnp.float32)
    supp_row = (row == n_sel).astype(jnp.float32)
    p_all = pn * (sel_mask * scale) + prn * supp_row             # (P_PAD, C)

    # ---- single MXU dot: all cosine maps at once -----------------------------
    sim = lax.dot_general(p_all.astype(jnp.bfloat16), qn_b,
                          (((1,), (1,)), ((), ())),
                          preferred_element_type=jnp.float32)    # (P_PAD, HW)
    supp_ref[...] = jnp.sum(sim * supp_row, axis=0, keepdims=True)  # (1, HW)

    # ---- bilinear upsample of all maps via one Kron matmul (lane-dense) -----
    up = jnp.dot(sim, k_ref[...],
                 preferred_element_type=jnp.float32)             # (P_PAD, N_PIX)

    # ---- per-pixel mean / unbiased variance over selected prototypes --------
    mean = jnp.sum(up * sel_mask, axis=0, keepdims=True) * (1.0 / n_sel)
    dev = (up - mean) * sel_mask                                 # two-pass form
    var = jnp.sum(dev * dev, axis=0, keepdims=True) * (1.0 / max(n_sel - 1, 1))
    mean_ref[...] = mean
    var_ref[...] = var


# ----------------------------------------------------------------------------
# Pallas wrappers (single grid step, full-array blocks)
# ----------------------------------------------------------------------------
def patch_embed(x_bf16, w_bf16):
    m, d = x_bf16.shape
    _, c = w_bf16.shape
    return pl.pallas_call(
        _patch_embed_kernel,
        grid=(1,),
        in_specs=[_full_spec((m, d)), _full_spec((d, c))],
        out_specs=_full_spec((m, c)),
        out_shape=jax.ShapeDtypeStruct((m, c), jnp.bfloat16),
        compiler_params=pltpu.CompilerParams(
            dimension_semantics=("arbitrary",), vmem_limit_bytes=VMEM_LIMIT),
    )(x_bf16, w_bf16)


def episode_fused(qry_flat, protos_pad, supp_flat, supp_mask_flat, kron_t):
    hw, c = qry_flat.shape
    p_pad = protos_pad.shape[0]
    n_pix = kron_t.shape[1]
    kern = functools.partial(_episode_fused_kernel,
                             scale=float(SCALER), n_sel=int(N_SELECT))
    return pl.pallas_call(
        kern,
        grid=(1,),
        in_specs=[_full_spec((hw, c)), _full_spec((p_pad, c)),
                  _full_spec((hw, c)), _full_spec((1, hw)),
                  _full_spec((hw, n_pix))],
        out_specs=(_full_spec((1, n_pix)), _full_spec((1, n_pix)),
                   _full_spec((1, hw))),
        out_shape=(jax.ShapeDtypeStruct((1, n_pix), jnp.float32),
                   jax.ShapeDtypeStruct((1, n_pix), jnp.float32),
                   jax.ShapeDtypeStruct((1, hw), jnp.float32)),
        compiler_params=pltpu.CompilerParams(
            dimension_semantics=("arbitrary",), vmem_limit_bytes=VMEM_LIMIT),
    )(qry_flat, protos_pad, supp_flat, supp_mask_flat, kron_t)


# ----------------------------------------------------------------------------
# Jitted device pipelines (few dispatches, few host syncs)
# ----------------------------------------------------------------------------
@jax.jit
def _extract_features(imgs_concat, dino_w):
    # TODO(synk): SAM ViT-H encoder / DINOv2 backbone are external pretrained
    # models; replaced by a deterministic synthetic patch embedding (Pallas).
    b_all = imgs_concat.shape[0]
    patches = imgs_concat.reshape(b_all, 3, GRID, PATCH, GRID, PATCH)
    patches = jnp.transpose(patches, (0, 2, 4, 1, 3, 5))
    patches = patches.reshape(b_all * GRID * GRID, PATCH_D)
    patches = jnp.pad(patches, ((0, 0), (0, K_PAD - PATCH_D)))      # K 48 -> 64
    w_pad = jnp.pad(dino_w, ((0, K_PAD - PATCH_D), (0, 0)))         # (64, 128)
    tokens = patch_embed(patches.astype(jnp.bfloat16),
                         w_pad.astype(jnp.bfloat16))                # Pallas matmul
    fts = tokens.reshape(b_all, GRID, GRID, DINO_C)                 # NHWC, lane-dense
    fts_up = resize_nhwc_mm(fts, L_G2F, L_G2F)                      # matmul resize
    return fts_up.astype(jnp.bfloat16)                              # (B, FEAT, FEAT, C)


@jax.jit
def _episodes_pre(supp_feats_hwc, supp_masks_img):
    # Batched over episodes: inputs for the host-side FPS — f32 features plus
    # the boolean foreground mask at FEAT resolution (bilinear,
    # align_corners=False, then != 0 — as in the reference).
    feats_f32 = supp_feats_hwc.astype(jnp.float32)
    ly = jnp.asarray(L_I2F_NA)
    t = jnp.einsum('oh,bhw->bow', ly, supp_masks_img,
                   preferred_element_type=jnp.float32)
    m_small = jnp.einsum('pw,bow->bop', ly, t,
                         preferred_element_type=jnp.float32)
    return feats_f32, (m_small != 0.0)


@jax.jit
def _episode_device(fg_protos, qry_feat_hwc, supp_feat_hwc, supp_mask_img):
    # --- prototype clustering / selection (tiny: plain jnp, no extra kernel) --
    pn = fg_protos * lax.rsqrt(
        jnp.maximum(jnp.sum(fg_protos * fg_protos, axis=-1, keepdims=True), 1e-24))
    gram = pn @ pn.T                                              # (FG_NUM, FG_NUM)
    mean_sims = jnp.mean(gram, axis=1)
    _, sel_idx = lax.top_k(mean_sims, N_SELECT)
    sel = jnp.take(fg_protos, sel_idx, axis=0)                    # (N_SELECT, C)
    sel_pad = jnp.zeros((P_PAD, DINO_C), jnp.float32).at[:N_SELECT].set(sel)

    qry_flat = qry_feat_hwc.reshape(HW, DINO_C)                   # (HW, C) bf16
    supp_flat = supp_feat_hwc.reshape(HW, DINO_C)                 # (HW, C) bf16
    mask_small = resize2d_mm(supp_mask_img, L_I2F_AC, L_I2F_AC)   # align_corners=True
    mask_small = mask_small.reshape(1, HW).astype(jnp.float32)

    # --- single fused Pallas kernel: cosine maps + supp proto + upsample + stats
    mean_hw, var_hw, sim_supp = episode_fused(
        qry_flat, sel_pad, supp_flat, mask_small,
        jnp.asarray(KRON_T, jnp.float32))

    # --- AMCPG selections, all on device --------------------------------------
    mean_flat = mean_hw.reshape(-1)
    var_flat = var_hw.reshape(-1)
    unc_flat = var_flat / (jnp.max(mean_flat) - jnp.min(mean_flat) + 1e-5)

    _, hi_sim_idx = lax.top_k(mean_flat, N_HIGH_SIM)
    _, hi_unc_idx = lax.top_k(unc_flat, N_HIGH_UNC)
    _, low_idx = lax.top_k(-mean_flat, N_NEG)
    median = jnp.sort(mean_flat)[(N_PIX - 1) // 2]                # torch lower-median
    unc_pos_mask = mean_flat[hi_unc_idx] > median
    _, g_idx = lax.top_k(sim_supp.reshape(-1), N_GUIDED)
    n_above = jnp.sum(mean_flat > median)

    hi_sim_coords = jnp.stack([hi_sim_idx % IMG, hi_sim_idx // IMG], axis=1)
    hi_unc_coords = jnp.stack([hi_unc_idx % IMG, hi_unc_idx // IMG], axis=1)
    neg_coords = jnp.stack([low_idx % IMG, low_idx // IMG], axis=1)
    g_coords = jnp.stack([g_idx % FEAT, g_idx // FEAT], axis=1)

    # TODO(synk): SamPredictor.predict (SAM prompt encoder + mask decoder) has
    # no Pallas equivalent; deterministic threshold of the mean similarity map
    # stands in for the predicted mask.
    best = (mean_hw.reshape(IMG, IMG) > median).astype(jnp.float32)[None, None]
    preds = jnp.concatenate([1.0 - best, best], axis=1)           # (1,2,H,W)

    return preds, (hi_sim_coords, hi_unc_coords, neg_coords, g_coords,
                   unc_pos_mask, n_above)


# ----------------------------------------------------------------------------
# Host-only pieces (data-dependent)
# ----------------------------------------------------------------------------
def compute_multiple_prototypes_host(fg_num, sup_fts_hwc, fg_mask, sampler):
    """Farthest-point-sampling prototype extraction (data-dependent -> host)."""
    # TODO(synk): data-dependent FPS / boolean gather has no clean Pallas equivalent.
    h, w, c = sup_fts_hwc.shape
    fg_mask_i = fg_mask.copy()
    if fg_mask_i.sum() < fg_num:
        flat = fg_mask_i.reshape(-1)
        flat[:fg_num] = True
        fg_mask_i = flat.reshape(h, w)
    pts = np.stack(np.where(fg_mask_i), axis=1)                  # (n, 2)
    centers = [pts[sampler.choice(pts.shape[0])]]
    for _ in range(fg_num - 1):
        cs = np.stack(centers, 0)
        dist = pts[:, None, :] - cs[None]
        centers.append(pts[int(np.argmax((dist ** 2).sum(-1).min(1)))])
    cs = np.stack(centers, 0)
    dist = pts[:, None, :] - cs[None]
    fg_labels = np.argmin((dist ** 2).sum(-1), axis=1)
    fg_feats = sup_fts_hwc[fg_mask_i]                            # (n, C)
    protos = []
    for i in range(fg_num):
        sel = fg_feats[fg_labels == i]
        protos.append(sel.mean(0) if len(sel) > 0 else np.zeros(c, np.float32))
    return np.stack(protos, 0).astype(np.float32)                # (fg_num, C)


def simple_kmeans_host(coords, k, iters=10):
    # TODO(synk): sklearn KMeans(random_state=42) init is not reproducible;
    # deterministic Lloyd iterations with first-k init.
    centers = coords[:k].astype(np.float64)
    for _ in range(iters):
        d = ((coords[:, None, :] - centers[None]) ** 2).sum(-1)
        labels = d.argmin(1)
        for j in range(k):
            sel = coords[labels == j]
            if len(sel) > 0:
                centers[j] = sel.mean(0)
    return centers


# ----------------------------------------------------------------------------
# FewShotSeg forward
# ----------------------------------------------------------------------------
def fewshot_forward(supp_imgs, supp_mask, qry_imgs, qry_mask, dino_w):
    n_ways = len(supp_imgs)
    n_shots = len(supp_imgs[0])
    n_queries = len(qry_imgs)
    assert n_ways == 1 and n_queries == 1
    supp_bs = supp_imgs[0][0].shape[0]
    qry_bs = qry_imgs[0].shape[0]
    img_h, img_w = supp_imgs[0][0].shape[-2:]
    assert img_h == IMG and img_w == IMG
    fg_sampler = np.random.RandomState(1289)

    # supp_mask -> (supp_bs, n_ways, n_shots, H, W)
    supp_mask_arr = jnp.stack([jnp.stack(way, 0) for way in supp_mask], 0)
    supp_mask_arr = jnp.transpose(supp_mask_arr, (2, 0, 1, 3, 4))

    # Concatenate all images (supports then queries), NCHW.
    imgs_concat = jnp.concatenate(
        [jnp.concatenate(way, 0) for way in supp_imgs]
        + [jnp.concatenate(qry_imgs, 0)], axis=0)                # (Ball, 3, H, W)

    fts_up = _extract_features(imgs_concat, dino_w)              # (Ball, FEAT, FEAT, C)

    n_supp = n_ways * n_shots * supp_bs
    supp_fts = fts_up[:n_supp].reshape(supp_bs, n_ways, n_shots, FEAT, FEAT, DINO_C)
    qry_fts = fts_up[n_supp:].reshape(qry_bs, n_queries, FEAT, FEAT, DINO_C)

    # TODO(synk): cv2.dilate-based periphery/dilated masks are computed in the
    # reference but never consumed downstream in the forward; omitted.

    # --- host sync #1 (batched over all episodes): FPS inputs ------------------
    supp_masks_f32 = supp_mask_arr[:, 0, 0].astype(jnp.float32)  # (supp_bs, H, W)
    feats_f32, fg_masks_small = jax.device_get(
        _episodes_pre(supp_fts[:, 0, 0], supp_masks_f32))

    # Host FPS per episode, then dispatch ALL per-episode device work before
    # fetching any result (overlaps host work with device execution).
    episode_results = []
    for epi in range(supp_bs):
        fg_protos = compute_multiple_prototypes_host(
            FG_NUM, np.asarray(feats_f32[epi]), np.asarray(fg_masks_small[epi]),
            fg_sampler)
        preds, small = _episode_device(
            jnp.asarray(fg_protos), qry_fts[epi, 0], supp_fts[epi, 0, 0],
            supp_masks_f32[epi])
        episode_results.append((preds, small))

    outputs = []
    input_points = None
    point_labels = None
    for epi in range(supp_bs):
        preds, small = episode_results[epi]
        (hi_sim_coords, hi_unc_coords, neg_coords, g_coords,
         unc_pos_mask, n_above) = jax.device_get(small)          # host sync #2

        # --- host point assembly (kmeans + data-dependent lengths) -------------
        n_clusters = min(5, len(hi_sim_coords))
        if n_clusters > 1:
            positive_points = simple_kmeans_host(
                hi_sim_coords.astype(np.float64), n_clusters)
        else:
            positive_points = hi_sim_coords[:1].astype(np.float64)

        unc_pos = hi_unc_coords[unc_pos_mask]
        if len(unc_pos) > 0:
            positive_points = np.concatenate(
                [positive_points, unc_pos[:min(3, len(unc_pos))]], axis=0)

        positive_points = np.concatenate([positive_points, g_coords], axis=0)

        target_complexity = float(n_above) / N_PIX
        max_points = int(10 * target_complexity) + 5
        positive_points = positive_points[:min(len(positive_points), max_points // 2)]
        negative_points = neg_coords[:min(len(neg_coords), max_points // 2)]
        input_points = np.concatenate([positive_points, negative_points], axis=0)
        point_labels = np.concatenate(
            [np.ones(len(positive_points)), np.zeros(len(negative_points))], axis=0)

        outputs.append(preds)

    output = jnp.stack(outputs, axis=1).reshape(-1, 2, img_h, img_w)
    return output, input_points, point_labels


# ----------------------------------------------------------------------------
# Main
# ----------------------------------------------------------------------------
if __name__ == "__main__":
    key = jax.random.PRNGKey(0)
    k_supp, k_qry, k_w = jax.random.split(key, 3)

    supp_img = jax.random.uniform(k_supp, (1, 3, IMG, IMG), jnp.float32)
    qry_img = jax.random.uniform(k_qry, (1, 3, IMG, IMG), jnp.float32)

    # deterministic support mask: centered square foreground
    mask = np.zeros((1, IMG, IMG), np.float32)
    mask[:, 10:22, 10:22] = 1.0
    supp_msk = jnp.asarray(mask)
    qry_msk = jnp.zeros((1, IMG, IMG), jnp.float32)   # unused by the forward

    # deterministic synthetic "DINOv2" patch-embedding weights
    dino_w = jax.random.normal(k_w, (PATCH_D, DINO_C), jnp.float32) * 0.02

    supp_imgs = [[supp_img]]      # way x shot x [B,3,H,W]
    supp_mask = [[supp_msk]]      # way x shot x [B,H,W]
    qry_imgs = [qry_img]          # N x [B,3,H,W]

    output, input_points, point_labels = fewshot_forward(
        supp_imgs, supp_mask, qry_imgs, qry_msk, dino_w)
    jax.block_until_ready(output)

    assert output.shape == (1, 2, IMG, IMG)
    assert input_points.shape[0] == point_labels.shape[0]
    assert np.isfinite(np.asarray(output)).all()
    print("KERNEL_OK")
</pallas_src>

<mosaic_0001>
module attributes {stable_mosaic.version = 11 : i64} {
  func.func @_patch_embed_kernel(%arg0: i32, %arg1: memref<128x64xbf16, #tpu.memory_space<vmem>>, %arg2: memref<64x128xbf16, #tpu.memory_space<vmem>>, %arg3: memref<128x128xbf16, #tpu.memory_space<vmem>>) attributes {dimension_semantics = [#tpu.dimension_semantics<arbitrary>], iteration_bounds = array<i64: 1>, scalar_prefetch = 0 : i64, scratch_operands = 0 : i64, tpu.core_type = #tpu.core_type<tc>, window_params = [{pipeline_mode = #tpu.pipeline_mode<synchronous>, transform_indices = @transform_0, window_bounds = array<i64: 128, 64>}, {pipeline_mode = #tpu.pipeline_mode<synchronous>, transform_indices = @transform_1, window_bounds = array<i64: 64, 128>}, {pipeline_mode = #tpu.pipeline_mode<synchronous>, transform_indices = @transform_2, window_bounds = array<i64: 128, 128>}]} {
    %c0 = arith.constant 0 : index
    %c0_0 = arith.constant 0 : index
    %0 = vector.load %arg1[%c0, %c0_0] : memref<128x64xbf16, #tpu.memory_space<vmem>>, vector<128x64xbf16>
    %c0_1 = arith.constant 0 : index
    %c0_2 = arith.constant 0 : index
    %1 = vector.load %arg2[%c0_1, %c0_2] : memref<64x128xbf16, #tpu.memory_space<vmem>>, vector<64x128xbf16>
    %cst = arith.constant dense<0.000000e+00> : vector<128x128xf32>
    %2 = tpu.matmul %0, %1, %cst {dimension_numbers = #tpu.dot_dimension_numbers<[1], [0], [0], [1], [0, 0, 1, 1], [], []>} : vector<128x64xbf16>, vector<64x128xbf16>, vector<128x128xf32> -> vector<128x128xf32>
    %3 = arith.truncf %2 : vector<128x128xf32> to vector<128x128xbf16>
    %c0_3 = arith.constant 0 : index
    %c0_4 = arith.constant 0 : index
    %4 = vector.load %arg3[%c0_3, %c0_4] : memref<128x128xbf16, #tpu.memory_space<vmem>>, vector<128x128xbf16>
    tpu.vector_store %arg3[%c0_3, %c0_4], %3 {strides = array<i32>} : memref<128x128xbf16, #tpu.memory_space<vmem>>, vector<128x128xbf16>,
    return
  }
  func.func @transform_0(%arg0: i32) -> (i32, i32) {
    %c0_i32 = arith.constant 0 : i32
    %c0_i32_0 = arith.constant 0 : i32
    %c0_i32_1 = arith.constant 0 : i32
    return %c0_i32, %c0_i32_0 : i32, i32
  }
  func.func @transform_1(%arg0: i32) -> (i32, i32) {
    %c0_i32 = arith.constant 0 : i32
    %c0_i32_0 = arith.constant 0 : i32
    %c0_i32_1 = arith.constant 0 : i32
    return %c0_i32, %c0_i32_0 : i32, i32
  }
  func.func @transform_2(%arg0: i32) -> (i32, i32) {
    %c0_i32 = arith.constant 0 : i32
    %c0_i32_0 = arith.constant 0 : i32
    %c0_i32_1 = arith.constant 0 : i32
    return %c0_i32, %c0_i32_0 : i32, i32
  }
}

</mosaic_0001>

<llo_original>
// kernel: _extract_features.1
$region0: #{_extract_features.1}
  #allocation0 [shape = 'u32[]', space=smem, size = 0x4, offset = 0x4, fixed_abs, tag = 'smem constant byte address 0x4 - core index']
  #allocation1 [shape = 'u32[144,128]{1,0:T(1,128)}', space=vmem, size = 0x12000, scoped, tag = 'internal scratch']
  %s0 = inlined_call_operand.vmem [shape: bf16[128,64], index: 0, kind: input, shape index: {}]
  %s1 = inlined_call_operand.vmem [shape: bf16[64,128], index: 1, kind: input, shape index: {}]
  %s2 = inlined_call_operand.vmem [shape: bf16[128,128], index: 2, kind: output, shape index: {}]
  %s3 = sld [smem:[#allocation0]]
  $region18: #{_extract_features.1} parent=0
    _
  %s5 = ssub.s32 1, %s3
  %s6 = scalar_select 0, %s5, %s3
  // Predicated region
  $region2: #{_extract_features.1} parent=0 // pred_check
    _
  $region3: #{_extract_features.1} parent=0 // pred_check_branch
    %8 = sbr.rel (0) target = $region5
  $region4: #{_extract_features.1} parent=0 // pred_region
    _
  $region5: #{_extract_features.1} parent=0 // pred_fallthru
    _
  // Predicated region
  $region6: #{_extract_features.1} parent=0 // pred_check
    _
  $region7: #{_extract_features.1} parent=0 // pred_check_branch
    %10 = sbr.rel (0) target = $region9
  $region8: #{_extract_features.1} parent=0 // pred_region
    _
  $region9: #{_extract_features.1} parent=0 // pred_fallthru
    _
  %v12 = vld [vmem:[%s0] sm:$0xf]
  %v13 = vld [vmem:[%s0 + $0x4] sm:$0xf]
  %v14 = vld [vmem:[%s0 + $0x8] sm:$0xf]
  %v15 = vld [vmem:[%s0 + $0xc] sm:$0xf]
  %v16 = vld [vmem:[%s0 + $0x10] sm:$0xf]
  %v17 = vld [vmem:[%s0 + $0x14] sm:$0xf]
  %v18 = vld [vmem:[%s0 + $0x18] sm:$0xf]
  %v19 = vld [vmem:[%s0 + $0x1c] sm:$0xf]
  %v20 = vld [vmem:[%s0 + $0x20] sm:$0xf]
  %v21 = vld [vmem:[%s0 + $0x24] sm:$0xf]
  %v22 = vld [vmem:[%s0 + $0x28] sm:$0xf]
  %v23 = vld [vmem:[%s0 + $0x2c] sm:$0xf]
  %v24 = vld [vmem:[%s0 + $0x30] sm:$0xf]
  %v25 = vld [vmem:[%s0 + $0x34] sm:$0xf]
  %v26 = vld [vmem:[%s0 + $0x38] sm:$0xf]
  %v27 = vld [vmem:[%s0 + $0x3c] sm:$0xf]
  %v28 = vld [vmem:[%s1] sm:$0xf]
  %v29 = vld [vmem:[%s1 + $0x4] sm:$0xf]
  %v30 = vld [vmem:[%s1 + $0x8] sm:$0xf]
  %v31 = vld [vmem:[%s1 + $0xc] sm:$0xf]
  %v32 = vld [vmem:[%s1 + $0x10] sm:$0xf]
  %v33 = vld [vmem:[%s1 + $0x14] sm:$0xf]
  %v34 = vld [vmem:[%s1 + $0x18] sm:$0xf]
  %v35 = vld [vmem:[%s1 + $0x1c] sm:$0xf]
  %v52 = vunpack.c.l.b16 %v12
  %v53 = vunpack.c.l.b16 %v13
  %v54 = vunpack.c.l.b16 %v14
  %v55 = vunpack.c.l.b16 %v15
  %v56 = vunpack.c.l.b16 %v16
  %v57 = vunpack.c.l.b16 %v17
  %v58 = vunpack.c.l.b16 %v18
  %v59 = vunpack.c.l.b16 %v19
  %v60 = vunpack.c.l.b16 %v20
  %v61 = vunpack.c.l.b16 %v21
  %v62 = vunpack.c.l.b16 %v22
  %v63 = vunpack.c.l.b16 %v23
  %v64 = vunpack.c.l.b16 %v24
  %v65 = vunpack.c.l.b16 %v25
  %v66 = vunpack.c.l.b16 %v26
  %v67 = vunpack.c.l.b16 %v27
  %v68 = vpack.c.b16 %v53, %v52
  %v69 = vpack.c.b16 %v55, %v54
  %v70 = vpack.c.b16 %v57, %v56
  %v71 = vpack.c.b16 %v59, %v58
  %v72 = vpack.c.b16 %v61, %v60
  %v73 = vpack.c.b16 %v63, %v62
  %v74 = vpack.c.b16 %v65, %v64
  %v75 = vpack.c.b16 %v67, %v66
  %v84 = vunpack.c.l.b16 %v28
  %v85 = vunpack.c.l.b16 %v29
  %v86 = vunpack.c.l.b16 %v30
  %v87 = vunpack.c.l.b16 %v31
  %v88 = vunpack.c.l.b16 %v32
  %v89 = vunpack.c.l.b16 %v33
  %v90 = vunpack.c.l.b16 %v34
  %v91 = vunpack.c.l.b16 %v35
  %v92 = vpack.c.b16 %v85, %v84
  %v93 = vpack.c.b16 %v87, %v86
  %v94 = vpack.c.b16 %v89, %v88
  %v95 = vpack.c.b16 %v91, %v90
  %vm100 = vcmask 523264
  %v102 = vsel %vm100, %v68, 0
  %v105 = vsel %vm100, %v69, 0
  %v108 = vsel %vm100, %v70, 0
  %v111 = vsel %vm100, %v71, 0
  %v114 = vsel %vm100, %v72, 0
  %v117 = vsel %vm100, %v73, 0
  %v120 = vsel %vm100, %v74, 0
  %v123 = vsel %vm100, %v75, 0
  %125 = vmatprep.subr.bf16.mxu0 0
  %126 = vmatpush1.bf16.msra.mxu0 %v92
  %127 = vmatprep.subr.bf16.mxu0 0
  %128 = vmatpush1.bf16.msra.mxu0 %v93
  %129 = vmatprep.subr.bf16.mxu0 0
  %130 = vmatpush1.bf16.msra.mxu0 %v94
  %131 = vmatprep.subr.bf16.mxu0 0
  %132 = vmatpush1.bf16.msra.mxu0 %v95
  %133 = vmatprep.subr.bf16.mxu0 0
  %134 = vmatpush1.bf16.msra.mxu0 0
  %135 = vmatprep.subr.bf16.mxu0 0
  %136 = vmatpush1.bf16.msra.mxu0 0
  %137 = vmatprep.subr.bf16.mxu0 0
  %138 = vmatpush1.bf16.msra.mxu0 0
  %139 = vmatprep.subr.bf16.mxu0 0
  %140 = vmatpush1.bf16.msra.mxu0 0
  %141 = vmatprep.subr.bf16.mxu0 0
  %142 = vmatpush1.bf16.msra.mxu0 0
  %143 = vmatprep.subr.bf16.mxu0 0
  %144 = vmatpush1.bf16.msra.mxu0 0
  %145 = vmatprep.subr.bf16.mxu0 0
  %146 = vmatpush1.bf16.msra.mxu0 0
  %147 = vmatprep.subr.bf16.mxu0 0
  %148 = vmatpush1.bf16.msra.mxu0 0
  %149 = vmatprep.subr.bf16.mxu0 0
  %150 = vmatpush1.bf16.msra.mxu0 0
  %151 = vmatprep.subr.bf16.mxu0 0
  %152 = vmatpush1.bf16.msra.mxu0 0
  %153 = vmatprep.subr.bf16.mxu0 0
  %154 = vmatpush1.bf16.msra.mxu0 0
  %155 = vmatprep.subr.bf16.mxu0 0
  %156 = vmatpush1.bf16.msra.mxu0 0
  %157 = vmatprep.mubr.bf16.mxu0 0
  %158 = vmatmul.mubr.bf16.gmra.mrb[0].mxu0 %v102
  %v159 = vpop.f32.mrb[0].mxu0
  %v160 = vadd.f32 0.0, %v159
  %v161 = vpop.f32.mrb[0].mxu0
  %v162 = vpop.f32.mrb[0].mxu0
  %v163 = vadd.f32 0.0, %v162
  %v164 = vpop.f32.mrb[0].mxu0
  %165 = vmatprep.mubr.bf16.mxu0 0
  %166 = vmatmul.mubr.bf16.gmra.mrb[0].mxu0 %v105
  %v167 = vpop.f32.mrb[0].mxu0
  %v168 = vadd.f32 0.0, %v167
  %v169 = vpop.f32.mrb[0].mxu0
  %v170 = vpop.f32.mrb[0].mxu0
  %v171 = vadd.f32 0.0, %v170
  %v172 = vpop.f32.mrb[0].mxu0
  %173 = vmatprep.mubr.bf16.mxu0 0
  %174 = vmatmul.mubr.bf16.gmra.mrb[0].mxu0 %v108
  %v175 = vpop.f32.mrb[0].mxu0
  %v176 = vadd.f32 0.0, %v175
  %v177 = vpop.f32.mrb[0].mxu0
  %v178 = vpop.f32.mrb[0].mxu0
  %v179 = vadd.f32 0.0, %v178
  %v180 = vpop.f32.mrb[0].mxu0
  %181 = vmatprep.mubr.bf16.mxu0 0
  %182 = vmatmul.mubr.bf16.gmra.mrb[0].mxu0 %v111
  %v183 = vpop.f32.mrb[0].mxu0
  %v184 = vadd.f32 0.0, %v183
  %v185 = vpop.f32.mrb[0].mxu0
  %v186 = vpop.f32.mrb[0].mxu0
  %v187 = vadd.f32 0.0, %v186
  %v188 = vpop.f32.mrb[0].mxu0
  %189 = vmatprep.mubr.bf16.mxu0 0
  %190 = vmatmul.mubr.bf16.gmra.mrb[0].mxu0 %v114
  %v191 = vpop.f32.mrb[0].mxu0
  %v192 = vadd.f32 0.0, %v191
  %v193 = vpop.f32.mrb[0].mxu0
  %v194 = vpop.f32.mrb[0].mxu0
  %v195 = vadd.f32 0.0, %v194
  %v196 = vpop.f32.mrb[0].mxu0
  %197 = vmatprep.mubr.bf16.mxu0 0
  %198 = vmatmul.mubr.bf16.gmra.mrb[0].mxu0 %v117
  %v199 = vpop.f32.mrb[0].mxu0
  %v200 = vadd.f32 0.0, %v199
  %v201 = vpop.f32.mrb[0].mxu0
  %v202 = vpop.f32.mrb[0].mxu0
  %v203 = vadd.f32 0.0, %v202
  %v204 = vpop.f32.mrb[0].mxu0
  %205 = vmatprep.mubr.bf16.mxu0 0
  %206 = vmatmul.mubr.bf16.gmra.mrb[0].mxu0 %v120
  %v207 = vpop.f32.mrb[0].mxu0
  %v208 = vadd.f32 0.0, %v207
  %v209 = vpop.f32.mrb[0].mxu0
  %v210 = vpop.f32.mrb[0].mxu0
  %v211 = vadd.f32 0.0, %v210
  %v212 = vpop.f32.mrb[0].mxu0
  %213 = vmatprep.mubr.bf16.mxu0 0
  %214 = vmatmul.mubr.bf16.gmra.mrb[0].mxu0 %v123
  %v215 = vpop.f32.mrb[0].mxu0
  %v216 = vadd.f32 0.0, %v215
  %v217 = vpop.f32.mrb[0].mxu0
  %v218 = vpop.f32.mrb[0].mxu0
  %v219 = vadd.f32 0.0, %v218
  %v220 = vpop.f32.mrb[0].mxu0
  %221 = vdwg.mxu0
  %v222 = vpack.c.bf16 %v163, %v160
  %v223 = vpack.c.bf16 %v171, %v168
  %v224 = vpack.c.bf16 %v179, %v176
  %v225 = vpack.c.bf16 %v187, %v184
  %v226 = vpack.c.bf16 %v195, %v192
  %v227 = vpack.c.bf16 %v203, %v200
  %v228 = vpack.c.bf16 %v211, %v208
  %v229 = vpack.c.bf16 %v219, %v216
  %v238 = vunpack.c.l.b16 %v222
  %v239 = vunpack.c.h.b16 %v222
  %v240 = vunpack.c.l.b16 %v223
  %v241 = vunpack.c.h.b16 %v223
  %v242 = vunpack.c.l.b16 %v224
  %v243 = vunpack.c.h.b16 %v224
  %v244 = vunpack.c.l.b16 %v225
  %v245 = vunpack.c.h.b16 %v225
  %v246 = vunpack.c.l.b16 %v226
  %v247 = vunpack.c.h.b16 %v226
  %v248 = vunpack.c.l.b16 %v227
  %v249 = vunpack.c.h.b16 %v227
  %v250 = vunpack.c.l.b16 %v228
  %v251 = vunpack.c.h.b16 %v228
  %v252 = vunpack.c.l.b16 %v229
  %v253 = vunpack.c.h.b16 %v229
  %v254 = vpack.c.b16 %v238, %v238
  %v255 = vpack.c.b16 %v239, %v239
  %v256 = vpack.c.b16 %v240, %v240
  %v257 = vpack.c.b16 %v241, %v241
  %v258 = vpack.c.b16 %v242, %v242
  %v259 = vpack.c.b16 %v243, %v243
  %v260 = vpack.c.b16 %v244, %v244
  %v261 = vpack.c.b16 %v245, %v245
  %v262 = vpack.c.b16 %v246, %v246
  %v263 = vpack.c.b16 %v247, %v247
  %v264 = vpack.c.b16 %v248, %v248
  %v265 = vpack.c.b16 %v249, %v249
  %v266 = vpack.c.b16 %v250, %v250
  %v267 = vpack.c.b16 %v251, %v251
  %v268 = vpack.c.b16 %v252, %v252
  %v269 = vpack.c.b16 %v253, %v253
  %286 = vst [vmem:[%s2] sm:$0xf] %v254
  %287 = vst [vmem:[%s2 + $0x4] sm:$0xf] %v255
  %288 = vst [vmem:[%s2 + $0x8] sm:$0xf] %v256
  %289 = vst [vmem:[%s2 + $0xc] sm:$0xf] %v257
  %290 = vst [vmem:[%s2 + $0x10] sm:$0xf] %v258
  %291 = vst [vmem:[%s2 + $0x14] sm:$0xf] %v259
  %292 = vst [vmem:[%s2 + $0x18] sm:$0xf] %v260
  %293 = vst [vmem:[%s2 + $0x1c] sm:$0xf] %v261
  %294 = vst [vmem:[%s2 + $0x20] sm:$0xf] %v262
  %295 = vst [vmem:[%s2 + $0x24] sm:$0xf] %v263
  %296 = vst [vmem:[%s2 + $0x28] sm:$0xf] %v264
  %297 = vst [vmem:[%s2 + $0x2c] sm:$0xf] %v265
  %298 = vst [vmem:[%s2 + $0x30] sm:$0xf] %v266
  %299 = vst [vmem:[%s2 + $0x34] sm:$0xf] %v267
  %300 = vst [vmem:[%s2 + $0x38] sm:$0xf] %v268
  %301 = vst [vmem:[%s2 + $0x3c] sm:$0xf] %v269
  // Predicated region
  $region10: #{_extract_features.1} parent=0 // pred_check
    _
  $region11: #{_extract_features.1} parent=0 // pred_check_branch
    %303 = sbr.rel (0) target = $region13
  $region12: #{_extract_features.1} parent=0 // pred_region
    _
  $region13: #{_extract_features.1} parent=0 // pred_fallthru
    _
  // Predicated region
  $region14: #{_extract_features.1} parent=0 // pred_check
    _
  $region15: #{_extract_features.1} parent=0 // pred_check_branch
    %305 = sbr.rel (0) target = $region17
  $region16: #{_extract_features.1} parent=0 // pred_region
    _
  $region17: #{_extract_features.1} parent=0 // pred_fallthru
    _

</llo_original>
